<compile_context>
chip_gen: v6e
topology: v6e:2x2x1
jax: 0.10.0
libtpu: 0.0.40
codegen_flags: <defaults>
</compile_context>

<pallas_src>
import jax
import jax.numpy as jnp
from jax.experimental import pallas as pl
from jax.experimental.pallas import tpu as pltpu


IN_FEATURES = 3            # nn.Linear(3, 1)
OUT_FEATURES = 1
_LANE = 128                # TPU lane width (last dim of every tile)
_SUBLANE = 8               # f32 sublane count
_MAX_TILE_ROWS = 256       # row-blocks per grid step -> 256*128 = 32K batch rows


def _linear_sigmoid_kernel(w_ref, b_ref, xt_ref, o_ref):
    """sigmoid(x @ W^T + b) on a dense batch tile.

    w_ref : (3,)              f32 SMEM  -- flattened weight row of Linear(3, 1)
    b_ref : (1,)              f32 SMEM  -- bias scalar
    xt_ref: (3, TR, 128)      f32 VMEM  -- x^T tile, one dense (TR,128) slab per feature
    o_ref : (TR, 128)         f32 VMEM  -- dense output tile
    """
    # Unrolled K=3 contraction as pure VPU FMAs (no MXU push / drain);
    # bias folded in from SMEM. Each xt_ref[k] is a full-occupancy (TR,128) slab.
    z = (xt_ref[0] * w_ref[0]
         + xt_ref[1] * w_ref[1]
         + xt_ref[2] * w_ref[2]
         + b_ref[0])
    o_ref[...] = jax.nn.sigmoid(z)   # EUP transcendental (separate VLIW slot)


@jax.jit
def neural_network_forward(x, weight, bias):
    """Equivalent of torch.sigmoid(nn.Linear(3, 1)(x)) for x of shape (B, 3)."""
    B, in_f = x.shape
    assert in_f == IN_FEATURES
    assert weight.shape == (OUT_FEATURES, IN_FEATURES)

    # Pad batch only to a multiple of 8*128 = 1024 rows (<= 1023 rows of waste),
    # then view it as (3, nb, 128) with nb a multiple of 8.
    row_quantum = _SUBLANE * _LANE
    b_pad = ((B + row_quantum - 1) // row_quantum) * row_quantum
    nb = b_pad // _LANE                       # number of 128-wide row-blocks
    tile_rows = min(_MAX_TILE_ROWS, nb)       # exact fit for small batches
    num_tiles = pl.cdiv(nb, tile_rows)

    # Layout plumbing (fused under jit): features -> leading axis, batch -> (nb, 128).
    x_t = jnp.pad(x.astype(jnp.float32).T, ((0, 0), (0, b_pad - B)))
    x_t = x_t.reshape(IN_FEATURES, nb, _LANE)

    w_flat = weight.reshape(IN_FEATURES).astype(jnp.float32)   # (3,)
    b_flat = bias.reshape(OUT_FEATURES).astype(jnp.float32)    # (1,)

    out = pl.pallas_call(
        _linear_sigmoid_kernel,
        out_shape=jax.ShapeDtypeStruct((nb, _LANE), jnp.float32),
        grid=(num_tiles,),
        in_specs=[
            pl.BlockSpec(memory_space=pltpu.MemorySpace.SMEM),   # weight (3,)
            pl.BlockSpec(memory_space=pltpu.MemorySpace.SMEM),   # bias   (1,)
            pl.BlockSpec((IN_FEATURES, tile_rows, _LANE),
                         lambda i: (0, i, 0)),                   # x^T tile
        ],
        out_specs=pl.BlockSpec((tile_rows, _LANE), lambda i: (i, 0)),
        compiler_params=pltpu.CompilerParams(
            dimension_semantics=("parallel",),   # v7x: 2 TCs shard the batch tiles
        ),
    )(w_flat, b_flat, x_t)

    # Back to the PyTorch output layout (B, 1); slice drops the padded rows.
    return out.reshape(b_pad)[:B].reshape(B, OUT_FEATURES)


if __name__ == "__main__":
    key = jax.random.PRNGKey(0)
    kx, kw, kb = jax.random.split(key, 3)

    B = 8
    x = jax.random.normal(kx, (B, IN_FEATURES), dtype=jnp.float32)

    # Deterministic PyTorch-style Linear init: U(-1/sqrt(in), 1/sqrt(in))
    bound = 1.0 / (IN_FEATURES ** 0.5)
    weight = jax.random.uniform(kw, (OUT_FEATURES, IN_FEATURES),
                                minval=-bound, maxval=bound, dtype=jnp.float32)
    bias = jax.random.uniform(kb, (OUT_FEATURES,),
                              minval=-bound, maxval=bound, dtype=jnp.float32)

    out = neural_network_forward(x, weight, bias)
    jax.block_until_ready(out)

    # Reference check in plain JAX
    ref = jax.nn.sigmoid(x @ weight.T + bias)
    assert out.shape == (B, OUT_FEATURES)
    assert jnp.allclose(out, ref, atol=1e-5), "mismatch vs reference"

    print("KERNEL_OK")
</pallas_src>

<mosaic_0001>
module attributes {stable_mosaic.version = 11 : i64} {
  func.func @_linear_sigmoid_kernel(%arg0: i32, %arg1: memref<3xf32, #tpu.memory_space<smem>>, %arg2: memref<1xf32, #tpu.memory_space<smem>>, %arg3: memref<3x8x128xf32, #tpu.memory_space<vmem>>, %arg4: memref<8x128xf32, #tpu.memory_space<vmem>>) attributes {dimension_semantics = [#tpu.dimension_semantics<parallel>], iteration_bounds = array<i64: 1>, scalar_prefetch = 0 : i64, scratch_operands = 0 : i64, tpu.core_type = #tpu.core_type<tc>, window_params = [{transform_indices = @transform_0, window_bounds = array<i64: 3>}, {transform_indices = @transform_1, window_bounds = array<i64: 1>}, {transform_indices = @transform_2, window_bounds = array<i64: 3, 8, 128>}, {transform_indices = @transform_3, window_bounds = array<i64: 8, 128>}]} {
    %c0 = arith.constant 0 : index
    %c0_0 = arith.constant 0 : index
    %c0_1 = arith.constant 0 : index
    %0 = vector.load %arg3[%c0, %c0_0, %c0_1] : memref<3x8x128xf32, #tpu.memory_space<vmem>>, vector<1x8x128xf32>
    %1 = vector.shape_cast %0 : vector<1x8x128xf32> to vector<8x128xf32>
    %c0_2 = arith.constant 0 : index
    %2 = memref.load %arg1[%c0_2] : memref<3xf32, #tpu.memory_space<smem>>
    %3 = vector.broadcast %2 : f32 to vector<8x128xf32>
    %4 = arith.mulf %1, %3 : vector<8x128xf32>
    %c1 = arith.constant 1 : index
    %c0_3 = arith.constant 0 : index
    %c0_4 = arith.constant 0 : index
    %5 = vector.load %arg3[%c1, %c0_3, %c0_4] : memref<3x8x128xf32, #tpu.memory_space<vmem>>, vector<1x8x128xf32>
    %6 = vector.shape_cast %5 : vector<1x8x128xf32> to vector<8x128xf32>
    %c1_5 = arith.constant 1 : index
    %7 = memref.load %arg1[%c1_5] : memref<3xf32, #tpu.memory_space<smem>>
    %8 = vector.broadcast %7 : f32 to vector<8x128xf32>
    %9 = arith.mulf %6, %8 : vector<8x128xf32>
    %10 = arith.addf %4, %9 : vector<8x128xf32>
    %c2 = arith.constant 2 : index
    %c0_6 = arith.constant 0 : index
    %c0_7 = arith.constant 0 : index
    %11 = vector.load %arg3[%c2, %c0_6, %c0_7] : memref<3x8x128xf32, #tpu.memory_space<vmem>>, vector<1x8x128xf32>
    %12 = vector.shape_cast %11 : vector<1x8x128xf32> to vector<8x128xf32>
    %c2_8 = arith.constant 2 : index
    %13 = memref.load %arg1[%c2_8] : memref<3xf32, #tpu.memory_space<smem>>
    %14 = vector.broadcast %13 : f32 to vector<8x128xf32>
    %15 = arith.mulf %12, %14 : vector<8x128xf32>
    %16 = arith.addf %10, %15 : vector<8x128xf32>
    %c0_9 = arith.constant 0 : index
    %17 = memref.load %arg2[%c0_9] : memref<1xf32, #tpu.memory_space<smem>>
    %18 = vector.broadcast %17 : f32 to vector<8x128xf32>
    %19 = arith.addf %16, %18 : vector<8x128xf32>
    %20 = arith.negf %19 : vector<8x128xf32>
    %21 = math.exp %20 : vector<8x128xf32>
    %cst = arith.constant 1.000000e+00 : f32
    %22 = vector.broadcast %cst : f32 to vector<8x128xf32>
    %23 = arith.addf %22, %21 : vector<8x128xf32>
    %24 = arith.divf %22, %23 : vector<8x128xf32>
    %c0_10 = arith.constant 0 : index
    %c0_11 = arith.constant 0 : index
    %25 = vector.load %arg4[%c0_10, %c0_11] : memref<8x128xf32, #tpu.memory_space<vmem>>, vector<8x128xf32>
    tpu.vector_store %arg4[%c0_10, %c0_11], %24 {strides = array<i32>} : memref<8x128xf32, #tpu.memory_space<vmem>>, vector<8x128xf32>,
    return
  }
  func.func @transform_0(%arg0: i32) -> i32 {
    %c0_i32 = arith.constant 0 : i32
    %c0_i32_0 = arith.constant 0 : i32
    return %c0_i32 : i32
  }
  func.func @transform_1(%arg0: i32) -> i32 {
    %c0_i32 = arith.constant 0 : i32
    %c0_i32_0 = arith.constant 0 : i32
    return %c0_i32 : i32
  }
  func.func @transform_2(%arg0: i32) -> (i32, i32, i32) {
    %c0_i32 = arith.constant 0 : i32
    %c0_i32_0 = arith.constant 0 : i32
    %c0_i32_1 = arith.constant 0 : i32
    return %c0_i32, %arg0, %c0_i32_0 : i32, i32, i32
  }
  func.func @transform_3(%arg0: i32) -> (i32, i32) {
    %c0_i32 = arith.constant 0 : i32
    %c0_i32_0 = arith.constant 0 : i32
    return %arg0, %c0_i32 : i32, i32
  }
}

</mosaic_0001>

<llo_original>
// kernel: neural_network_forward.1
$region0: #{neural_network_forward.1}
  #allocation0 [shape = 'u32[]', space=smem, size = 0x4, offset = 0x4, fixed_abs, tag = 'smem constant byte address 0x4 - core index']
  #allocation1 [shape = 'u32[144,128]{1,0:T(1,128)}', space=vmem, size = 0x12000, scoped, tag = 'internal scratch']
  #allocation2 [shape = 'f32[1]{0:T(128)S(6)}', space=smem, size = 0x200, scoped, tag = 'scoped memory for neural_network_forward.1']
  %s0 = inlined_call_operand.vmem [shape: f32[3], index: 0, kind: input, shape index: {}]
  %s1 = inlined_call_operand.<no memory space> [shape: f32[1], index: 1, kind: input, shape index: {}]
  %s2 = inlined_call_operand.vmem [shape: f32[3,8,128], index: 2, kind: input, shape index: {}]
  %s3 = inlined_call_operand.vmem [shape: f32[8,128], index: 3, kind: output, shape index: {}]
  %s4 = sld [smem:[#allocation0]]
  $region26: #{neural_network_forward.1} parent=0
    _
  %s6 = ssub.s32 1, %s4
  %s7 = scalar_select 0, %s6, %s4
  %8 = sst [smem:[#allocation2]] %s1
  $region1: #{neural_network_forward.1} parent=0
    #allocation3 [shape = 'u8[512]{0}', space=smem, size = 0x200, scoped, tag = 'input window, operand 0, single buffered']
    #allocation4 [shape = 's32[1]{0}', space=sflag, size = 0x4, scoped, tag = 'scoped memory for neural_network_forward.1']
    %9 = vsyncpa [#allocation4], 0
    // Predicated region
    $region2: #{neural_network_forward.1} parent=1 // pred_check
      _
    $region3: #{neural_network_forward.1} parent=1 // pred_check_branch
      %11 = sbr.rel (0) target = $region5
    $region4: #{neural_network_forward.1} parent=1 // pred_region
      %s13 = ssub.s32 16, 16
      %14 = vsyncadd [#allocation4], %s13
      %s16 = sshll.u32 %s0, 4
      %s17 = int_to_ptr.vmem [resolvable:$true] %s16
      %19 = dma.vmem_to_smem %s17, 16, [#allocation3], [#allocation4]
    $region5: #{neural_network_forward.1} parent=1 // pred_fallthru
      _
    // Predicated region
    $region6: #{neural_network_forward.1} parent=1 // pred_check
      _
    $region7: #{neural_network_forward.1} parent=1 // pred_check_branch
      %21 = sbr.rel (0) target = $region9
    $region8: #{neural_network_forward.1} parent=1 // pred_region
      _
    $region9: #{neural_network_forward.1} parent=1 // pred_fallthru
      _
    // Predicated region
    $region10: #{neural_network_forward.1} parent=1 // pred_check
      _
    $region11: #{neural_network_forward.1} parent=1 // pred_check_branch
      %23 = sbr.rel (0) target = $region13
    $region12: #{neural_network_forward.1} parent=1 // pred_region
      _
    $region13: #{neural_network_forward.1} parent=1 // pred_fallthru
      _
    // Predicated region
    $region14: #{neural_network_forward.1} parent=1 // pred_check
      _
    $region15: #{neural_network_forward.1} parent=1 // pred_check_branch
      %25 = sbr.rel (0) target = $region17
    $region16: #{neural_network_forward.1} parent=1 // pred_region
      %26 = dma.done [#allocation4], 16
    $region17: #{neural_network_forward.1} parent=1 // pred_fallthru
      _
    %27 = sfence
    %v28 = vld [vmem:[%s2] sm:$0xff]
    %s29 = sld [smem:[#allocation3]]
    %v30 = vstv %s29
    %v31 = vmul.f32 %v28, %v30
    %s32 = scalar_lea.vmem %s2, 8
    %v33 = vld [vmem:[%s32] sm:$0xff]
    %s34 = sld [smem:[#allocation3 + $0x1]]
    %v35 = vstv %s34
    %v36 = vmul.f32 %v33, %v35
    %v37 = vadd.f32 %v31, %v36
    %s38 = scalar_lea.vmem %s2, 16
    %v39 = vld [vmem:[%s38] sm:$0xff]
    %s40 = sld [smem:[#allocation3 + $0x2]]
    %v41 = vstv %s40
    %v42 = vmul.f32 %v39, %v41
    %v43 = vadd.f32 %v37, %v42
    %s44 = sld [smem:[#allocation2]]
    %v45 = vstv %s44
    %v46 = vadd.f32 %v43, %v45
    %v47 = vxor.u32 %v46, 2147483648
    %v48 = vmul.f32 %v47, 1.442695
    %v49 = vpow.pop %v48
    %v50 = vadd.f32 %v49, 1.0
    %v51 = vrcp.pop %v50
    %v52 = vmul.f32 1.0, %v51
    %53 = vst [vmem:[%s3] sm:$0xff] %v52
    // Predicated region
    $region18: #{neural_network_forward.1} parent=1 // pred_check
      _
    $region19: #{neural_network_forward.1} parent=1 // pred_check_branch
      %55 = sbr.rel (0) target = $region21
    $region20: #{neural_network_forward.1} parent=1 // pred_region
      _
    $region21: #{neural_network_forward.1} parent=1 // pred_fallthru
      _
    // Predicated region
    $region22: #{neural_network_forward.1} parent=1 // pred_check
      _
    $region23: #{neural_network_forward.1} parent=1 // pred_check_branch
      %57 = sbr.rel (0) target = $region25
    $region24: #{neural_network_forward.1} parent=1 // pred_region
      _
    $region25: #{neural_network_forward.1} parent=1 // pred_fallthru
      _
    %58 = vsyncpa [#allocation4], 1

</llo_original>
